<compile_context>
chip_gen: v5e
topology: v5e:2x2
jax: 0.10.0
libtpu: 0.0.40
codegen_flags: <defaults>
</compile_context>

<pallas_src>
import functools

import jax
import jax.numpy as jnp
from jax import lax
from jax.experimental import pallas as pl
from jax.experimental.pallas import tpu as pltpu


LANES = 128       # lane width of a vreg
ACC_ROWS = 24     # lcm(8 sublanes, 3 axes): accumulator height
ROW_ALIGN = 48    # lcm(16 bf16 sublanes, 3 axes): block-row alignment


def _wloss_kernel(pred_ref, gt_ref, wpat_ref, out_ref, acc_ref, *,
                  n_rows, block_rows):
    """Accumulates per-position sums of (pred - gt)^2; weights applied at the end."""
    step = pl.program_id(0)

    @pl.when(step == 0)
    def _init():
        acc_ref[...] = jnp.zeros_like(acc_ref)

    diff = pred_ref[...].astype(jnp.float32) - gt_ref[...].astype(jnp.float32)
    sq = diff * diff

    if n_rows % block_rows != 0:
        # Static ragged boundary: zero the contribution of out-of-range rows
        # (their DMA'd contents are unspecified).  Select, not multiply, so any
        # garbage NaN/Inf cannot leak through.
        row = step * block_rows + lax.broadcasted_iota(
            jnp.int32, (block_rows, LANES), 0)
        sq = jnp.where(row < n_rows, sq, 0.0)

    # Fold rows mod ACC_ROWS and accumulate (pure VALU adds; the reshape is a
    # free view because ACC_ROWS is a multiple of the 8-row sublane tile).
    acc_ref[...] += jnp.sum(
        sq.reshape(block_rows // ACC_ROWS, ACC_ROWS, LANES), axis=0)

    @pl.when(step == pl.num_programs(0) - 1)
    def _finalize():
        # Each accumulator position has a fixed (x|y|z) residue -> one weighted
        # cross-lane reduce, executed once.
        out_ref[...] = jnp.sum(acc_ref[...] * wpat_ref[...], keepdims=True)


def weighted_translation_loss_ref(pred, gt, weights):
    """Pure-JAX reference matching the PyTorch module semantics."""
    pred = pred.astype(jnp.float32)
    gt = gt.astype(jnp.float32)
    squared_error = (pred - gt) ** 2
    weighted = squared_error * jnp.asarray(weights, jnp.float32).reshape(1, -1)
    return jnp.mean(weighted)


def weighted_translation_loss(pred_translation, gt_translation, weights, *,
                              block_rows=12288, min_elements=32768,
                              force_pallas=False,
                              vmem_limit_bytes=48 * 1024 * 1024):
    """
    Args:
        pred_translation: (B, 3) float32 / bfloat16
        gt_translation:   (B, 3) same shape as pred
        weights:          (3,)   per-axis weights
    Returns:
        scalar float32: mean over all B*3 elements of weight_d * (pred - gt)^2
    """
    pred = jnp.asarray(pred_translation)
    gt = jnp.asarray(gt_translation)
    assert pred.shape == gt.shape and pred.ndim == 2
    B, D = pred.shape
    w = jnp.asarray(weights, dtype=jnp.float32).reshape(D)
    total = B * D

    # Small problems: let XLA fuse elementwise+mean (kernel launch is overhead).
    # The folded-weight trick below also assumes the translation axis is 3-wide.
    if (total < min_elements and not force_pallas) or D != 3:
        return weighted_translation_loss_ref(pred, gt, w)

    # Flatten: free bitcast of the contiguous row-major (B, 3) arrays.
    pred_flat = pred.reshape(-1)
    gt_flat = gt.reshape(-1)

    # View as a dense (n_rows, 128) matrix.  Free when 3B % 128 == 0 (e.g. any
    # B that is a multiple of 128); otherwise a single pad copy is needed.
    # TODO(synk): a 1-D BlockSpec over (3B,) would avoid this pad copy too.
    if total % LANES != 0:
        padded = ((total + LANES - 1) // LANES) * LANES
        pred_flat = jnp.pad(pred_flat, (0, padded - total))
        gt_flat = jnp.pad(gt_flat, (0, padded - total))
    n_rows = pred_flat.shape[0] // LANES
    pred_mat = pred_flat.reshape(n_rows, LANES)
    gt_mat = gt_flat.reshape(n_rows, LANES)

    # Align the block height: multiple of ROW_ALIGN keeps bf16 sublane packing
    # dense and keeps block_elems % 3 == 0 (needed for the weight fold), and we
    # never make the block larger than the (rounded-up) problem.
    requested = max(ROW_ALIGN, (block_rows // ROW_ALIGN) * ROW_ALIGN)
    rounded_rows = ((n_rows + ROW_ALIGN - 1) // ROW_ALIGN) * ROW_ALIGN
    block_rows = min(requested, rounded_rows)

    grid = (pl.cdiv(n_rows, block_rows),)

    # Resident (24, 128) weight pattern: position (p, l) always holds elements
    # whose axis index is (p*128 + l) % 3 (since flat index = batch*3 + axis).
    w_pat = w[jnp.arange(ACC_ROWS * LANES, dtype=jnp.int32) % 3].reshape(
        ACC_ROWS, LANES)

    itemsize = jnp.dtype(pred.dtype).itemsize
    cost = pl.CostEstimate(
        flops=4 * total,
        transcendentals=0,
        bytes_accessed=2 * total * itemsize + ACC_ROWS * LANES * 4 + 4,
    )

    kernel = functools.partial(_wloss_kernel, n_rows=n_rows,
                               block_rows=block_rows)

    out = pl.pallas_call(
        kernel,
        out_shape=jax.ShapeDtypeStruct((1, 1), jnp.float32),
        grid=grid,
        in_specs=[
            pl.BlockSpec((block_rows, LANES), lambda i: (i, 0)),   # pred rows
            pl.BlockSpec((block_rows, LANES), lambda i: (i, 0)),   # gt rows
            pl.BlockSpec((ACC_ROWS, LANES), lambda i: (0, 0)),     # weight pattern (resident)
        ],
        out_specs=pl.BlockSpec((1, 1), lambda i: (0, 0)),
        scratch_shapes=[pltpu.VMEM((ACC_ROWS, LANES), jnp.float32)],
        compiler_params=pltpu.CompilerParams(
            dimension_semantics=("arbitrary",),
            vmem_limit_bytes=vmem_limit_bytes,
        ),
        cost_estimate=cost,
    )(pred_mat, gt_mat, w_pat)

    # Divide by the *true* (unpadded) element count.
    return out[0, 0] * jnp.float32(1.0 / total)


if __name__ == "__main__":
    key = jax.random.PRNGKey(0)
    k1, k2, k3, k4 = jax.random.split(key, 4)
    weights = jnp.array([1.0, 2.0, 0.5], dtype=jnp.float32)

    # --- Tiny batch (3B % 128 != 0): pad fallback + single partial block. ---
    B1 = 8
    pred1 = jax.random.normal(k1, (B1, 3), dtype=jnp.float32)
    gt1 = jax.random.normal(k2, (B1, 3), dtype=jnp.float32)
    out1 = jax.block_until_ready(
        weighted_translation_loss(pred1, gt1, weights, force_pallas=True))
    ref1 = weighted_translation_loss_ref(pred1, gt1, weights)
    assert jnp.allclose(out1, ref1, rtol=1e-6, atol=1e-6), (out1, ref1)

    # --- Zero-copy path (3B % 128 == 0), several grid steps, ragged last
    #     block masked in-kernel (99 rows, block of 48). ---
    B2 = 4224
    pred2 = jax.random.normal(k3, (B2, 3), dtype=jnp.float32)
    gt2 = jax.random.normal(k4, (B2, 3), dtype=jnp.float32)
    out2 = jax.block_until_ready(
        weighted_translation_loss(pred2, gt2, weights, block_rows=48,
                                  force_pallas=True))
    ref2 = weighted_translation_loss_ref(pred2, gt2, weights)
    assert jnp.allclose(out2, ref2, rtol=1e-5, atol=1e-6), (out2, ref2)

    # --- bf16 inputs (cast to f32 in-register inside the kernel). ---
    pred3 = pred2.astype(jnp.bfloat16)
    gt3 = gt2.astype(jnp.bfloat16)
    out3 = jax.block_until_ready(
        weighted_translation_loss(pred3, gt3, weights, block_rows=48,
                                  force_pallas=True))
    ref3 = weighted_translation_loss_ref(pred3, gt3, weights)
    assert jnp.allclose(out3, ref3, rtol=1e-5, atol=1e-6), (out3, ref3)

    # --- Default small-batch entry takes the fused-XLA fast path (no kernel). ---
    out_fast = jax.block_until_ready(
        weighted_translation_loss(pred1, gt1, weights))
    assert jnp.allclose(out_fast, ref1, rtol=1e-6, atol=1e-6), (out_fast, ref1)

    print("KERNEL_OK")
</pallas_src>

<mosaic_0001>
module attributes {stable_mosaic.version = 11 : i64} {
  func.func @_wloss_kernel(%arg0: i32, %arg1: memref<48x128xf32, #tpu.memory_space<vmem>>, %arg2: memref<48x128xf32, #tpu.memory_space<vmem>>, %arg3: memref<24x128xf32, #tpu.memory_space<vmem>>, %arg4: memref<1x1xf32, #tpu.memory_space<vmem>>, %arg5: memref<24x128xf32, #tpu.memory_space<vmem>>) attributes {dimension_semantics = [#tpu.dimension_semantics<arbitrary>], iteration_bounds = array<i64: 1>, scalar_prefetch = 0 : i64, scratch_operands = 1 : i64, tpu.core_type = #tpu.core_type<tc>, window_params = [{transform_indices = @transform_0, window_bounds = array<i64: 48, 128>}, {transform_indices = @transform_1, window_bounds = array<i64: 48, 128>}, {pipeline_mode = #tpu.pipeline_mode<synchronous>, transform_indices = @transform_2, window_bounds = array<i64: 24, 128>}, {pipeline_mode = #tpu.pipeline_mode<synchronous>, transform_indices = @transform_3, window_bounds = array<i64: 1, 1>}]} {
    %c0_i32 = arith.constant 0 : i32
    %0 = arith.cmpi eq, %arg0, %c0_i32 : i32
    %1 = arith.extui %0 : i1 to i32
    %c0_i32_0 = arith.constant 0 : i32
    %2 = arith.cmpi ne, %1, %c0_i32_0 : i32
    scf.if %2 {
      %cst_11 = arith.constant 0.000000e+00 : f32
      %23 = vector.broadcast %cst_11 : f32 to vector<24x128xf32>
      %c0_12 = arith.constant 0 : index
      %c0_13 = arith.constant 0 : index
      %24 = vector.load %arg5[%c0_12, %c0_13] : memref<24x128xf32, #tpu.memory_space<vmem>>, vector<24x128xf32>
      tpu.vector_store %arg5[%c0_12, %c0_13], %23 {strides = array<i32>} : memref<24x128xf32, #tpu.memory_space<vmem>>, vector<24x128xf32>,
    } else {
    }
    %c0 = arith.constant 0 : index
    %c0_1 = arith.constant 0 : index
    %3 = vector.load %arg1[%c0, %c0_1] : memref<48x128xf32, #tpu.memory_space<vmem>>, vector<48x128xf32>
    %c0_2 = arith.constant 0 : index
    %c0_3 = arith.constant 0 : index
    %4 = vector.load %arg2[%c0_2, %c0_3] : memref<48x128xf32, #tpu.memory_space<vmem>>, vector<48x128xf32>
    %5 = arith.subf %3, %4 : vector<48x128xf32>
    %6 = arith.mulf %5, %5 : vector<48x128xf32>
    %c48_i32 = arith.constant 48 : i32
    %7 = arith.muli %arg0, %c48_i32 : i32
    %8 = tpu.iota {dimensions = array<i32: 0>} : vector<48x128xi32>
    %9 = vector.broadcast %7 : i32 to vector<48x128xi32>
    %10 = arith.addi %9, %8 : vector<48x128xi32>
    %c1_i32 = arith.constant 1 : i32
    %11 = vector.broadcast %c1_i32 : i32 to vector<48x128xi32>
    %12 = arith.cmpi slt, %10, %11 : vector<48x128xi32>
    %cst = arith.constant 0.000000e+00 : f32
    %13 = vector.broadcast %cst : f32 to vector<48x128xf32>
    %14 = arith.select %12, %6, %13 : vector<48x128xi1>, vector<48x128xf32>
    %c0_4 = arith.constant 0 : index
    %c0_5 = arith.constant 0 : index
    %15 = vector.load %arg5[%c0_4, %c0_5] : memref<24x128xf32, #tpu.memory_space<vmem>>, vector<24x128xf32>
    %16 = vector.shape_cast %14 : vector<48x128xf32> to vector<2x24x128xf32>
    %cst_6 = arith.constant dense<0.000000e+00> : vector<24x128xf32>
    %17 = vector.multi_reduction <add>, %16, %cst_6 [0] : vector<2x24x128xf32> to vector<24x128xf32>
    %18 = arith.addf %15, %17 : vector<24x128xf32>
    %c0_7 = arith.constant 0 : index
    %c0_8 = arith.constant 0 : index
    %19 = vector.load %arg5[%c0_7, %c0_8] : memref<24x128xf32, #tpu.memory_space<vmem>>, vector<24x128xf32>
    tpu.vector_store %arg5[%c0_7, %c0_8], %18 {strides = array<i32>} : memref<24x128xf32, #tpu.memory_space<vmem>>, vector<24x128xf32>,
    %c0_i32_9 = arith.constant 0 : i32
    %20 = arith.cmpi eq, %arg0, %c0_i32_9 : i32
    %21 = arith.extui %20 : i1 to i32
    %c0_i32_10 = arith.constant 0 : i32
    %22 = arith.cmpi ne, %21, %c0_i32_10 : i32
    scf.if %22 {
      %c0_11 = arith.constant 0 : index
      %c0_12 = arith.constant 0 : index
      %23 = vector.load %arg5[%c0_11, %c0_12] : memref<24x128xf32, #tpu.memory_space<vmem>>, vector<24x128xf32>
      %c0_13 = arith.constant 0 : index
      %c0_14 = arith.constant 0 : index
      %24 = vector.load %arg3[%c0_13, %c0_14] : memref<24x128xf32, #tpu.memory_space<vmem>>, vector<24x128xf32>
      %25 = arith.mulf %23, %24 : vector<24x128xf32>
      %26 = vector.shape_cast %25 : vector<24x128xf32> to vector<1x24x128xf32>
      %cst_15 = arith.constant dense<0.000000e+00> : vector<1xf32>
      %27 = vector.multi_reduction <add>, %26, %cst_15 [1, 2] : vector<1x24x128xf32> to vector<1xf32>
      %28 = vector.shape_cast %27 : vector<1xf32> to vector<1x1x1xf32>
      %29 = vector.extract %28[0, 0, 0] : f32 from vector<1x1x1xf32>
      %30 = vector.broadcast %29 : f32 to vector<1x1xf32>
      %c0_16 = arith.constant 0 : index
      %c0_17 = arith.constant 0 : index
      %31 = vector.load %arg4[%c0_16, %c0_17] : memref<1x1xf32, #tpu.memory_space<vmem>>, vector<1x1xf32>
      tpu.vector_store %arg4[%c0_16, %c0_17], %30 {strides = array<i32>} : memref<1x1xf32, #tpu.memory_space<vmem>>, vector<1x1xf32>,
    } else {
    }
    return
  }
  func.func @transform_0(%arg0: i32) -> (i32, i32) {
    %c0_i32 = arith.constant 0 : i32
    %c0_i32_0 = arith.constant 0 : i32
    return %arg0, %c0_i32 : i32, i32
  }
  func.func @transform_1(%arg0: i32) -> (i32, i32) {
    %c0_i32 = arith.constant 0 : i32
    %c0_i32_0 = arith.constant 0 : i32
    return %arg0, %c0_i32 : i32, i32
  }
  func.func @transform_2(%arg0: i32) -> (i32, i32) {
    %c0_i32 = arith.constant 0 : i32
    %c0_i32_0 = arith.constant 0 : i32
    %c0_i32_1 = arith.constant 0 : i32
    return %c0_i32, %c0_i32_0 : i32, i32
  }
  func.func @transform_3(%arg0: i32) -> (i32, i32) {
    %c0_i32 = arith.constant 0 : i32
    %c0_i32_0 = arith.constant 0 : i32
    %c0_i32_1 = arith.constant 0 : i32
    return %c0_i32, %c0_i32_0 : i32, i32
  }
}

</mosaic_0001>

<llo_original>
// kernel: tpu_custom_call.1
$region0: #{tpu_custom_call.1}
  #allocation0 [shape = 'u32[]', space=smem, size = 0x4, offset = 0x4, fixed_abs, tag = 'smem constant byte address 0x4 - core index']
  #allocation1 [shape = 'u32[72,128]{1,0:T(1,128)}', space=vmem, size = 0x9000, scoped, tag = 'internal scratch']
  #allocation2 [shape = 'f32[24,128]{1,0:T(8,128)}', space=vmem, size = 0x3000, scoped, tag = 'scratch operand']
  %s0 = inlined_call_operand.hbm [shape: f32[1,128], index: 0, kind: input, shape index: {}]
  %s1 = inlined_call_operand.hbm [shape: f32[1,128], index: 1, kind: input, shape index: {}]
  %s2 = inlined_call_operand.hbm [shape: f32[24,128], index: 2, kind: input, shape index: {}]
  %s3 = inlined_call_operand.hbm [shape: f32[1,1], index: 3, kind: output, shape index: {}]
  %s4 = sld [smem:[#allocation0]]
  $region42: #{tpu_custom_call.1} parent=0
    _
  %s6 = ssub.s32 1, %s4
  %s7 = scalar_select 0, %s6, %s4
  $region1: #{tpu_custom_call.1} parent=0
    #allocation3 [shape = 'u8[24576]{0}', space=vmem, size = 0x6000, scoped, tag = 'input window, operand 0, single buffered']
    #allocation4 [shape = 's32[1]{0}', space=sflag, size = 0x4, scoped, tag = 'scoped memory for tpu_custom_call.1']
    #allocation5 [shape = 's32[1]{0}', space=sflag, size = 0x4, scoped, tag = 'scoped memory for tpu_custom_call.1']
    #allocation6 [shape = 'u8[24576]{0}', space=vmem, size = 0x6000, scoped, tag = 'input window, operand 1, single buffered']
    #allocation7 [shape = 's32[1]{0}', space=sflag, size = 0x4, scoped, tag = 'scoped memory for tpu_custom_call.1']
    #allocation8 [shape = 'u8[12288]{0}', space=vmem, size = 0x3000, scoped, tag = 'input window, operand 2, single buffered']
    #allocation9 [shape = 'u8[512]{0}', space=vmem, size = 0x400, scoped, tag = 'output window, operand 0, single buffered']
    %8 = vsyncpa [#allocation4], 0
    %9 = vsyncpa [#allocation7], 0
    %10 = vsyncpa [#allocation5], 0
    // Predicated region
    $region2: #{tpu_custom_call.1} parent=1 // pred_check
      _
    $region3: #{tpu_custom_call.1} parent=1 // pred_check_branch
      %12 = sbr.rel (0) target = $region5
    $region4: #{tpu_custom_call.1} parent=1 // pred_region
      %14 = vsyncadd [#allocation4], 752
      %s15 = sshll.u32 %s0, 4
      %s16 = int_to_ptr.hbm [resolvable:$true] %s15
      %s17 = sshll.u32 [#allocation3], 4
      %s18 = int_to_ptr.vmem [resolvable:$true] %s17
      %23 = dma.hbm_to_vmem [thread:$0]  %s16, 16, %s18, [#allocation4], 16, 16, 1
    $region5: #{tpu_custom_call.1} parent=1 // pred_fallthru
      _
    // Predicated region
    $region6: #{tpu_custom_call.1} parent=1 // pred_check
      _
    $region7: #{tpu_custom_call.1} parent=1 // pred_check_branch
      %25 = sbr.rel (0) target = $region9
    $region8: #{tpu_custom_call.1} parent=1 // pred_region
      %27 = vsyncadd [#allocation7], 752
      %s28 = sshll.u32 %s1, 4
      %s29 = int_to_ptr.hbm [resolvable:$true] %s28
      %s30 = sshll.u32 [#allocation6], 4
      %s31 = int_to_ptr.vmem [resolvable:$true] %s30
      %36 = dma.hbm_to_vmem [thread:$0]  %s29, 16, %s31, [#allocation7], 16, 16, 1
    $region9: #{tpu_custom_call.1} parent=1 // pred_fallthru
      _
    // Predicated region
    $region10: #{tpu_custom_call.1} parent=1 // pred_check
      _
    $region11: #{tpu_custom_call.1} parent=1 // pred_check_branch
      %38 = sbr.rel (0) target = $region13
    $region12: #{tpu_custom_call.1} parent=1 // pred_region
      %40 = vsyncadd [#allocation7], 0
      %s41 = sshll.u32 %s2, 4
      %s42 = int_to_ptr.hbm [resolvable:$true] %s41
      %s43 = sshll.u32 [#allocation8], 4
      %s44 = int_to_ptr.vmem [resolvable:$true] %s43
      %49 = dma.hbm_to_vmem [thread:$0]  %s42, 384, %s44, [#allocation7], 128, 128, 8
    $region13: #{tpu_custom_call.1} parent=1 // pred_fallthru
      _
    // Predicated region
    $region14: #{tpu_custom_call.1} parent=1 // pred_check
      _
    $region15: #{tpu_custom_call.1} parent=1 // pred_check_branch
      %51 = sbr.rel (0) target = $region17
    $region16: #{tpu_custom_call.1} parent=1 // pred_region
      %53 = dma.done [#allocation4], 768
    $region17: #{tpu_custom_call.1} parent=1 // pred_fallthru
      _
    // Predicated region
    $region18: #{tpu_custom_call.1} parent=1 // pred_check
      _
    $region19: #{tpu_custom_call.1} parent=1 // pred_check_branch
      %55 = sbr.rel (0) target = $region21
    $region20: #{tpu_custom_call.1} parent=1 // pred_region
      %57 = dma.done [#allocation7], 768
    $region21: #{tpu_custom_call.1} parent=1 // pred_fallthru
      _
    // Predicated region
    $region22: #{tpu_custom_call.1} parent=1 // pred_check
      _
    $region23: #{tpu_custom_call.1} parent=1 // pred_check_branch
      %59 = sbr.rel (0) target = $region25
    $region24: #{tpu_custom_call.1} parent=1 // pred_region
      %61 = dma.done [#allocation7], 384
    $region25: #{tpu_custom_call.1} parent=1 // pred_fallthru
      _
    %p62 = scmp.eq.s32.totalorder 0, 0
    // Predicated region
    $region26: #{tpu_custom_call.1} parent=1 // pred_check
      %p63 = pneg %p62
    $region27: #{tpu_custom_call.1} parent=1 // pred_check_branch
      %65 = sbr.rel (%p63) target = $region29
    $region28: #{tpu_custom_call.1} parent=1 // pred_region
      %66 = vst [vmem:[#allocation2] sm:$0xff] 0.0
      %67 = vst [vmem:[#allocation2 + $0x8] sm:$0xff] 0.0
      %68 = vst [vmem:[#allocation2 + $0x10] sm:$0xff] 0.0
    $region29: #{tpu_custom_call.1} parent=1 // pred_fallthru
      _
    %v69 = vld [vmem:[#allocation3] sm:$0xff]
    %v70 = vld [vmem:[#allocation3 + $0x8] sm:$0xff]
    %v71 = vld [vmem:[#allocation3 + $0x10] sm:$0xff]
    %v72 = vld [vmem:[#allocation3 + $0x18] sm:$0xff]
    %v73 = vld [vmem:[#allocation3 + $0x20] sm:$0xff]
    %v74 = vld [vmem:[#allocation3 + $0x28] sm:$0xff]
    %v75 = vld [vmem:[#allocation6] sm:$0xff]
    %v76 = vld [vmem:[#allocation6 + $0x8] sm:$0xff]
    %v77 = vld [vmem:[#allocation6 + $0x10] sm:$0xff]
    %v78 = vld [vmem:[#allocation6 + $0x18] sm:$0xff]
    %v79 = vld [vmem:[#allocation6 + $0x20] sm:$0xff]
    %v80 = vld [vmem:[#allocation6 + $0x28] sm:$0xff]
    %v81 = vsub.f32 %v69, %v75
    %v82 = vsub.f32 %v70, %v76
    %v83 = vsub.f32 %v71, %v77
    %v84 = vsub.f32 %v72, %v78
    %v85 = vsub.f32 %v73, %v79
    %v86 = vsub.f32 %v74, %v80
    %v87 = vmul.f32 %v81, %v81
    %v88 = vmul.f32 %v82, %v82
    %v89 = vmul.f32 %v83, %v83
    %v90 = vmul.f32 %v84, %v84
    %v91 = vmul.f32 %v85, %v85
    %v92 = vmul.f32 %v86, %v86
    %s93 = smul.u32 0, 48
    %v94 = vlaneseq
    %v95 = vshrl.u32 %v94, 7
    %v96 = vadd.s32 %v95, 8
    %v97 = vadd.s32 %v95, 16
    %v98 = vadd.s32 %v95, 24
    %v99 = vadd.s32 %v95, 32
    %v100 = vadd.s32 %v95, 40
    %v101 = vstv %s93
    %v102 = vadd.s32 %v101, %v95
    %v103 = vadd.s32 %v101, %v96
    %v104 = vadd.s32 %v101, %v97
    %v105 = vadd.s32 %v101, %v98
    %v106 = vadd.s32 %v101, %v99
    %v107 = vadd.s32 %v101, %v100
    %vm108 = vcmp.lt.s32.totalorder %v102, 1
    %vm109 = vcmp.lt.s32.totalorder %v103, 1
    %vm110 = vcmp.lt.s32.totalorder %v104, 1
    %vm111 = vcmp.lt.s32.totalorder %v105, 1
    %vm112 = vcmp.lt.s32.totalorder %v106, 1
    %vm113 = vcmp.lt.s32.totalorder %v107, 1
    %v114 = vsel %vm108, %v87, 0.0
    %v115 = vsel %vm109, %v88, 0.0
    %v116 = vsel %vm110, %v89, 0.0
    %v117 = vsel %vm111, %v90, 0.0
    %v118 = vsel %vm112, %v91, 0.0
    %v119 = vsel %vm113, %v92, 0.0
    %v120 = vld [vmem:[#allocation2] sm:$0xff]
    %v121 = vld [vmem:[#allocation2 + $0x8] sm:$0xff]
    %v122 = vld [vmem:[#allocation2 + $0x10] sm:$0xff]
    %v123 = vadd.f32 %v114, %v117
    %v124 = vadd.f32 %v115, %v118
    %v125 = vadd.f32 %v116, %v119
    %v126 = vadd.f32 %v120, %v123
    %v127 = vadd.f32 %v121, %v124
    %v128 = vadd.f32 %v122, %v125
    %129 = vst [vmem:[#allocation2] sm:$0xff] %v126
    %130 = vst [vmem:[#allocation2 + $0x8] sm:$0xff] %v127
    %131 = vst [vmem:[#allocation2 + $0x10] sm:$0xff] %v128
    // Predicated region
    $region30: #{tpu_custom_call.1} parent=1 // pred_check
      %p132 = pneg %p62
    $region31: #{tpu_custom_call.1} parent=1 // pred_check_branch
      %134 = sbr.rel (%p132) target = $region33
    $region32: #{tpu_custom_call.1} parent=1 // pred_region
      %v135 = vld [vmem:[#allocation2] sm:$0xff]
      %v136 = vld [vmem:[#allocation2 + $0x8] sm:$0xff]
      %v137 = vld [vmem:[#allocation2 + $0x10] sm:$0xff]
      %v138 = vld [vmem:[#allocation8] sm:$0xff]
      %v139 = vld [vmem:[#allocation8 + $0x8] sm:$0xff]
      %v140 = vld [vmem:[#allocation8 + $0x10] sm:$0xff]
      %v141 = vmul.f32 %v135, %v138
      %v142 = vmul.f32 %v136, %v139
      %v143 = vmul.f32 %v137, %v140
      %v144 = vadd.f32 %v141, %v142
      %v145 = vadd.f32 %v144, %v143
      %146 = vadd.xlane.f32.xlu0 %v145
      %v147 = vpop.xlane.xlu0 %146
      %v148 = vrot.slane %v147, 4
      %v149 = vadd.f32 %v147, %v148
      %v150 = vrot.slane %v149, 2
      %v151 = vadd.f32 %v149, %v150
      %v152 = vrot.slane %v151, 1
      %v153 = vadd.f32 %v151, %v152
      %s154 = vtos %v153
      %v155 = vstv %s154
      %vm156 = vcmask 0
      %157 = vst.msk [vmem:[#allocation9] sm:$0x1] %vm156, %v155
    $region33: #{tpu_custom_call.1} parent=1 // pred_fallthru
      _
    // Predicated region
    $region34: #{tpu_custom_call.1} parent=1 // pred_check
      _
    $region35: #{tpu_custom_call.1} parent=1 // pred_check_branch
      %159 = sbr.rel (0) target = $region37
    $region36: #{tpu_custom_call.1} parent=1 // pred_region
      %161 = vsyncadd [#allocation5], 0
      %s163 = sshll.u32 [#allocation9], 4
      %s164 = int_to_ptr.vmem [resolvable:$true] %s163
      %s165 = sshll.u32 %s3, 4
      %s166 = int_to_ptr.hbm [resolvable:$true] %s165
      %168 = dma.vmem_to_hbm [thread:$0]  %s164, 16, %s166, [#allocation5]
    $region37: #{tpu_custom_call.1} parent=1 // pred_fallthru
      _
    // Predicated region
    $region38: #{tpu_custom_call.1} parent=1 // pred_check
      _
    $region39: #{tpu_custom_call.1} parent=1 // pred_check_branch
      %170 = sbr.rel (0) target = $region41
    $region40: #{tpu_custom_call.1} parent=1 // pred_region
      %172 = dma.done [#allocation5], 16
    $region41: #{tpu_custom_call.1} parent=1 // pred_fallthru
      _
    %173 = vsyncpa [#allocation4], 1
    %174 = vsyncpa [#allocation7], 1
    %175 = vsyncpa [#allocation5], 1

</llo_original>
